<compile_context>
chip_gen: v5e
topology: v5e:2x2
jax: 0.10.0
libtpu: 0.0.40
codegen_flags: <defaults>
</compile_context>

<pallas_src>
import jax
import jax.numpy as jnp
from jax import lax
from jax.experimental import pallas as pl
from jax.experimental.pallas import tpu as pltpu

IN_FEATURES = 50      # K
OUT_FEATURES = 20     # N
PACKED_ROWS = 64      # sublane-padded rows of the packed param buffer
BIAS_ROW = 56         # 8-aligned sublane offset of the bias row


def linear_tanh_kernel(x_ref, wb_ref, o_ref):
    # x: [B, K], wb: [64, N] packed (rows 0..K-1 = W.T, row BIAS_ROW = bias)
    w_t = wb_ref[0:IN_FEATURES, :]                 # [K, N], static slice
    b = wb_ref[BIAS_ROW:BIAS_ROW + 1, :]           # [1, N], 8-aligned row
    acc = lax.dot_general(
        x_ref[...],
        w_t,
        dimension_numbers=(((1,), (0,)), ((), ())),
        preferred_element_type=jnp.float32,
        precision=lax.Precision.HIGHEST,
    )
    o_ref[...] = jnp.tanh(acc + b).astype(o_ref.dtype)


def linear_tanh(x, wb_packed):
    """x: [B, 50], wb_packed: [64, 20] -> tanh(x @ W.T + b) as [B, 20]."""
    B, K = x.shape
    N = wb_packed.shape[1]
    bytes_accessed = (x.size + wb_packed.size + B * N) * 4
    return pl.pallas_call(
        linear_tanh_kernel,
        out_shape=jax.ShapeDtypeStruct((B, N), jnp.float32),
        in_specs=[
            pl.BlockSpec(memory_space=pltpu.MemorySpace.VMEM),
            pl.BlockSpec(memory_space=pltpu.MemorySpace.VMEM),
        ],
        out_specs=pl.BlockSpec(memory_space=pltpu.MemorySpace.VMEM),
        cost_estimate=pl.CostEstimate(
            flops=2 * B * K * N,
            transcendentals=B * N,
            bytes_accessed=bytes_accessed,
        ),
    )(x, wb_packed)


def pack_params(weight, bias):
    """One-time parameter packing: weight [N, K] (PyTorch layout), bias [N]."""
    n, k = weight.shape
    wb = jnp.zeros((PACKED_ROWS, n), jnp.float32)
    wb = wb.at[:k, :].set(weight.T.astype(jnp.float32))
    wb = wb.at[BIAS_ROW, :].set(bias.astype(jnp.float32))
    return wb


@jax.jit
def model_tanh_forward(x, wb_packed):
    """Equivalent of ModelTanh.forward."""
    out = linear_tanh(x, wb_packed)   # [25, 20]
    return out.reshape(20, 5, 5)      # free row-major view, outside kernel


if __name__ == "__main__":
    key = jax.random.PRNGKey(0)
    k_x, k_w, k_b = jax.random.split(key, 3)

    batch = 25  # batch * out_features == 20 * 5 * 5

    # torch.nn.Linear default init: U[-1/sqrt(fan_in), +1/sqrt(fan_in)]
    bound = 1.0 / jnp.sqrt(jnp.float32(IN_FEATURES))
    weight = jax.random.uniform(
        k_w, (OUT_FEATURES, IN_FEATURES), jnp.float32, -bound, bound
    )
    bias = jax.random.uniform(k_b, (OUT_FEATURES,), jnp.float32, -bound, bound)

    # One-time setup: transpose + pack weight and bias into a single buffer.
    wb_packed = pack_params(weight, bias)

    x = jax.random.normal(k_x, (batch, IN_FEATURES), jnp.float32)

    result = model_tanh_forward(x, wb_packed)
    jax.block_until_ready(result)

    # Sanity check against pure-JAX reference
    ref = jnp.tanh(x @ weight.T + bias).reshape(20, 5, 5)
    assert result.shape == (20, 5, 5)
    assert jnp.allclose(result, ref, atol=1e-5, rtol=1e-5)

    print("KERNEL_OK")
</pallas_src>

<mosaic_0001>
module attributes {stable_mosaic.version = 11 : i64} {
  func.func @linear_tanh_kernel(%arg0: memref<25x50xf32, #tpu.memory_space<vmem>>, %arg1: memref<64x20xf32, #tpu.memory_space<vmem>>, %arg2: memref<25x20xf32, #tpu.memory_space<vmem>>) attributes {dimension_semantics = [], scalar_prefetch = 0 : i64, scratch_operands = 0 : i64, tpu.core_type = #tpu.core_type<tc>} {
    %c0 = arith.constant 0 : index
    %c0_0 = arith.constant 0 : index
    %0 = vector.load %arg1[%c0, %c0_0] : memref<64x20xf32, #tpu.memory_space<vmem>>, vector<50x20xf32>
    %c56 = arith.constant 56 : index
    %c0_1 = arith.constant 0 : index
    %1 = vector.load %arg1[%c56, %c0_1] : memref<64x20xf32, #tpu.memory_space<vmem>>, vector<1x20xf32>
    %c0_2 = arith.constant 0 : index
    %c0_3 = arith.constant 0 : index
    %2 = vector.load %arg0[%c0_2, %c0_3] : memref<25x50xf32, #tpu.memory_space<vmem>>, vector<25x50xf32>
    %cst = arith.constant dense<0.000000e+00> : vector<25x20xf32>
    %3 = tpu.matmul %2, %0, %cst {dimension_numbers = #tpu.dot_dimension_numbers<[1], [0], [0], [1], [0, 0, 1, 1], [], []>, precision = #tpu.contract_precision<fp32>} : vector<25x50xf32>, vector<50x20xf32>, vector<25x20xf32> -> vector<25x20xf32>
    %4 = vector.broadcast %1 : vector<1x20xf32> to vector<25x20xf32>
    %5 = arith.addf %3, %4 : vector<25x20xf32>
    %6 = math.tanh %5 : vector<25x20xf32>
    %c0_4 = arith.constant 0 : index
    %c0_5 = arith.constant 0 : index
    %7 = vector.load %arg2[%c0_4, %c0_5] : memref<25x20xf32, #tpu.memory_space<vmem>>, vector<25x20xf32>
    tpu.vector_store %arg2[%c0_4, %c0_5], %6 {strides = array<i32>} : memref<25x20xf32, #tpu.memory_space<vmem>>, vector<25x20xf32>,
    return
  }
}

</mosaic_0001>

<llo_original>
// kernel: model_tanh_forward.1
$region0: #{model_tanh_forward.1}
  #allocation0 [shape = 'u32[]', space=smem, size = 0x4, offset = 0x4, fixed_abs, tag = 'smem constant byte address 0x4 - core index']
  #allocation1 [shape = 'u32[72,128]{1,0:T(1,128)}', space=vmem, size = 0x9000, scoped, tag = 'internal scratch']
  %s0 = inlined_call_operand.vmem [shape: f32[25,50], index: 0, kind: input, shape index: {}]
  %s1 = inlined_call_operand.vmem [shape: f32[64,20], index: 1, kind: input, shape index: {}]
  %s2 = inlined_call_operand.vmem [shape: f32[25,20], index: 2, kind: output, shape index: {}]
  %s3 = sld [smem:[#allocation0]]
  $region18: #{model_tanh_forward.1} parent=0
    _
  %s5 = ssub.s32 1, %s3
  %s6 = scalar_select 0, %s5, %s3
  // Predicated region
  $region2: #{model_tanh_forward.1} parent=0 // pred_check
    _
  $region3: #{model_tanh_forward.1} parent=0 // pred_check_branch
    %8 = sbr.rel (0) target = $region5
  $region4: #{model_tanh_forward.1} parent=0 // pred_region
    _
  $region5: #{model_tanh_forward.1} parent=0 // pred_fallthru
    _
  // Predicated region
  $region6: #{model_tanh_forward.1} parent=0 // pred_check
    _
  $region7: #{model_tanh_forward.1} parent=0 // pred_check_branch
    %10 = sbr.rel (0) target = $region9
  $region8: #{model_tanh_forward.1} parent=0 // pred_region
    _
  $region9: #{model_tanh_forward.1} parent=0 // pred_fallthru
    _
  %v11 = vld [vmem:[%s1] sm:$0xff]
  %v12 = vld [vmem:[%s1 + $0x8] sm:$0xff]
  %v13 = vld [vmem:[%s1 + $0x10] sm:$0xff]
  %v14 = vld [vmem:[%s1 + $0x18] sm:$0xff]
  %v15 = vld [vmem:[%s1 + $0x20] sm:$0xff]
  %v16 = vld [vmem:[%s1 + $0x28] sm:$0xff]
  %v17 = vld [vmem:[%s1 + $0x30] sm:$0x3]
  %v18 = vld [vmem:[%s1 + $0x38] sm:$0x1]
  %v19 = vld [vmem:[%s0] sm:$0xff]
  %v20 = vld [vmem:[%s0 + $0x8] sm:$0xff]
  %v21 = vld [vmem:[%s0 + $0x10] sm:$0xff]
  %v22 = vld [vmem:[%s0 + $0x18] sm:$0x1]
  %v23 = vperm.slane %v18, 0
  %vm24 = vcmask 408576
  %v26 = vsel %vm24, %v19, 0
  %v29 = vsel %vm24, %v20, 0
  %v32 = vsel %vm24, %v21, 0
  %v35 = vsel %vm24, %v22, 0
  %vm37 = vcmask 1041408
  %v39 = vsel %vm37, %v17, 0
  %41 = vmatpush.msra.mxu0 0.0
  %42 = vmatpush.msra.mxu0 0.0
  %43 = vmatpush.msra.mxu0 0.0
  %44 = vmatpush.msra.mxu0 0.0
  %45 = vmatpush.msra.mxu0 0.0
  %46 = vmatpush.msra.mxu0 0.0
  %47 = vmatpush.msra.mxu0 0.0
  %48 = vmatpush.msra.mxu0 0.0
  %49 = vmatpush.msra.mxu0 0.0
  %v50 = vand.u32 %v39, 4294901760
  %51 = vmatpush.msra.mxu0 %v50
  %v52 = vand.u32 %v16, 4294901760
  %53 = vmatpush.msra.mxu0 %v52
  %v54 = vand.u32 %v15, 4294901760
  %55 = vmatpush.msra.mxu0 %v54
  %v56 = vand.u32 %v14, 4294901760
  %57 = vmatpush.msra.mxu0 %v56
  %v58 = vand.u32 %v13, 4294901760
  %59 = vmatpush.msra.mxu0 %v58
  %v60 = vand.u32 %v12, 4294901760
  %61 = vmatpush.msra.mxu0 %v60
  %v62 = vand.u32 %v11, 4294901760
  %63 = vmatpush.msra.mxu0 %v62
  %v64 = vand.u32 %v26, 4294901760
  %v65 = vsub.f32 %v26, %v64
  %v66 = vand.u32 %v65, 4294901760
  %v67 = vsub.f32 %v65, %v66
  %v68 = vand.u32 %v67, 4294901760
  %69 = vmatmul.f32.gmra.mxu0 %v68
  %v70 = vpop.f32.mrf.mxu0
  %v71 = vadd.f32 %v23, %v70
  %v72 = vand.u32 %v29, 4294901760
  %v73 = vsub.f32 %v29, %v72
  %v74 = vand.u32 %v73, 4294901760
  %v75 = vsub.f32 %v73, %v74
  %v76 = vand.u32 %v75, 4294901760
  %77 = vmatmul.f32.gmra.mxu0 %v76
  %v78 = vpop.f32.mrf.mxu0
  %v79 = vadd.f32 %v23, %v78
  %v80 = vand.u32 %v32, 4294901760
  %v81 = vsub.f32 %v32, %v80
  %v82 = vand.u32 %v81, 4294901760
  %v83 = vsub.f32 %v81, %v82
  %v84 = vand.u32 %v83, 4294901760
  %85 = vmatmul.f32.gmra.mxu0 %v84
  %v86 = vpop.f32.mrf.mxu0
  %v87 = vadd.f32 %v23, %v86
  %v88 = vand.u32 %v35, 4294901760
  %v89 = vsub.f32 %v35, %v88
  %v90 = vand.u32 %v89, 4294901760
  %v91 = vsub.f32 %v89, %v90
  %v92 = vand.u32 %v91, 4294901760
  %93 = vmatmul.f32.gmra.mxu0 %v92
  %v94 = vpop.f32.mrf.mxu0
  %v95 = vadd.f32 %v23, %v94
  %96 = vdwg.mxu0
  %97 = vmatpush.msra.mxu0 0.0
  %98 = vmatpush.msra.mxu0 0.0
  %99 = vmatpush.msra.mxu0 0.0
  %100 = vmatpush.msra.mxu0 0.0
  %101 = vmatpush.msra.mxu0 0.0
  %102 = vmatpush.msra.mxu0 0.0
  %103 = vmatpush.msra.mxu0 0.0
  %104 = vmatpush.msra.mxu0 0.0
  %105 = vmatpush.msra.mxu0 0.0
  %v106 = vand.u32 %v39, 4294901760
  %v107 = vsub.f32 %v39, %v106
  %v108 = vand.u32 %v107, 4294901760
  %v109 = vsub.f32 %v107, %v108
  %v110 = vand.u32 %v109, 4294901760
  %111 = vmatpush.msra.mxu0 %v110
  %v112 = vand.u32 %v16, 4294901760
  %v113 = vsub.f32 %v16, %v112
  %v114 = vand.u32 %v113, 4294901760
  %v115 = vsub.f32 %v113, %v114
  %v116 = vand.u32 %v115, 4294901760
  %117 = vmatpush.msra.mxu0 %v116
  %v118 = vand.u32 %v15, 4294901760
  %v119 = vsub.f32 %v15, %v118
  %v120 = vand.u32 %v119, 4294901760
  %v121 = vsub.f32 %v119, %v120
  %v122 = vand.u32 %v121, 4294901760
  %123 = vmatpush.msra.mxu0 %v122
  %v124 = vand.u32 %v14, 4294901760
  %v125 = vsub.f32 %v14, %v124
  %v126 = vand.u32 %v125, 4294901760
  %v127 = vsub.f32 %v125, %v126
  %v128 = vand.u32 %v127, 4294901760
  %129 = vmatpush.msra.mxu0 %v128
  %v130 = vand.u32 %v13, 4294901760
  %v131 = vsub.f32 %v13, %v130
  %v132 = vand.u32 %v131, 4294901760
  %v133 = vsub.f32 %v131, %v132
  %v134 = vand.u32 %v133, 4294901760
  %135 = vmatpush.msra.mxu0 %v134
  %v136 = vand.u32 %v12, 4294901760
  %v137 = vsub.f32 %v12, %v136
  %v138 = vand.u32 %v137, 4294901760
  %v139 = vsub.f32 %v137, %v138
  %v140 = vand.u32 %v139, 4294901760
  %141 = vmatpush.msra.mxu0 %v140
  %v142 = vand.u32 %v11, 4294901760
  %v143 = vsub.f32 %v11, %v142
  %v144 = vand.u32 %v143, 4294901760
  %v145 = vsub.f32 %v143, %v144
  %v146 = vand.u32 %v145, 4294901760
  %147 = vmatpush.msra.mxu0 %v146
  %v148 = vand.u32 %v26, 4294901760
  %149 = vmatmul.f32.gmra.mxu0 %v148
  %v150 = vpop.f32.mrf.mxu0
  %v151 = vadd.f32 %v71, %v150
  %v152 = vand.u32 %v29, 4294901760
  %153 = vmatmul.f32.gmra.mxu0 %v152
  %v154 = vpop.f32.mrf.mxu0
  %v155 = vadd.f32 %v79, %v154
  %v156 = vand.u32 %v32, 4294901760
  %157 = vmatmul.f32.gmra.mxu0 %v156
  %v158 = vpop.f32.mrf.mxu0
  %v159 = vadd.f32 %v87, %v158
  %v160 = vand.u32 %v35, 4294901760
  %161 = vmatmul.f32.gmra.mxu0 %v160
  %v162 = vpop.f32.mrf.mxu0
  %v163 = vadd.f32 %v95, %v162
  %164 = vdwg.mxu0
  %165 = vmatpush.msra.mxu0 0.0
  %166 = vmatpush.msra.mxu0 0.0
  %167 = vmatpush.msra.mxu0 0.0
  %168 = vmatpush.msra.mxu0 0.0
  %169 = vmatpush.msra.mxu0 0.0
  %170 = vmatpush.msra.mxu0 0.0
  %171 = vmatpush.msra.mxu0 0.0
  %172 = vmatpush.msra.mxu0 0.0
  %173 = vmatpush.msra.mxu0 0.0
  %v174 = vand.u32 %v39, 4294901760
  %v175 = vsub.f32 %v39, %v174
  %176 = vmatpush.msra.mxu0 %v175
  %v177 = vand.u32 %v16, 4294901760
  %v178 = vsub.f32 %v16, %v177
  %179 = vmatpush.msra.mxu0 %v178
  %v180 = vand.u32 %v15, 4294901760
  %v181 = vsub.f32 %v15, %v180
  %182 = vmatpush.msra.mxu0 %v181
  %v183 = vand.u32 %v14, 4294901760
  %v184 = vsub.f32 %v14, %v183
  %185 = vmatpush.msra.mxu0 %v184
  %v186 = vand.u32 %v13, 4294901760
  %v187 = vsub.f32 %v13, %v186
  %188 = vmatpush.msra.mxu0 %v187
  %v189 = vand.u32 %v12, 4294901760
  %v190 = vsub.f32 %v12, %v189
  %191 = vmatpush.msra.mxu0 %v190
  %v192 = vand.u32 %v11, 4294901760
  %v193 = vsub.f32 %v11, %v192
  %194 = vmatpush.msra.mxu0 %v193
  %v195 = vand.u32 %v26, 4294901760
  %v196 = vsub.f32 %v26, %v195
  %197 = vmatmul.f32.gmra.mxu0 %v196
  %v198 = vpop.f32.mrf.mxu0
  %v199 = vadd.f32 %v151, %v198
  %v200 = vand.u32 %v29, 4294901760
  %v201 = vsub.f32 %v29, %v200
  %202 = vmatmul.f32.gmra.mxu0 %v201
  %v203 = vpop.f32.mrf.mxu0
  %v204 = vadd.f32 %v155, %v203
  %v205 = vand.u32 %v32, 4294901760
  %v206 = vsub.f32 %v32, %v205
  %207 = vmatmul.f32.gmra.mxu0 %v206
  %v208 = vpop.f32.mrf.mxu0
  %v209 = vadd.f32 %v159, %v208
  %v210 = vand.u32 %v35, 4294901760
  %v211 = vsub.f32 %v35, %v210
  %212 = vmatmul.f32.gmra.mxu0 %v211
  %v213 = vpop.f32.mrf.mxu0
  %v214 = vadd.f32 %v163, %v213
  %215 = vdwg.mxu0
  %216 = vmatpush.msra.mxu0 0.0
  %217 = vmatpush.msra.mxu0 0.0
  %218 = vmatpush.msra.mxu0 0.0
  %219 = vmatpush.msra.mxu0 0.0
  %220 = vmatpush.msra.mxu0 0.0
  %221 = vmatpush.msra.mxu0 0.0
  %222 = vmatpush.msra.mxu0 0.0
  %223 = vmatpush.msra.mxu0 0.0
  %224 = vmatpush.msra.mxu0 0.0
  %v225 = vand.u32 %v39, 4294901760
  %226 = vmatpush.msra.mxu0 %v225
  %v227 = vand.u32 %v16, 4294901760
  %228 = vmatpush.msra.mxu0 %v227
  %v229 = vand.u32 %v15, 4294901760
  %230 = vmatpush.msra.mxu0 %v229
  %v231 = vand.u32 %v14, 4294901760
  %232 = vmatpush.msra.mxu0 %v231
  %v233 = vand.u32 %v13, 4294901760
  %234 = vmatpush.msra.mxu0 %v233
  %v235 = vand.u32 %v12, 4294901760
  %236 = vmatpush.msra.mxu0 %v235
  %v237 = vand.u32 %v11, 4294901760
  %238 = vmatpush.msra.mxu0 %v237
  %v239 = vand.u32 %v26, 4294901760
  %v240 = vsub.f32 %v26, %v239
  %v241 = vand.u32 %v240, 4294901760
  %242 = vmatmul.f32.gmra.mxu0 %v241
  %v243 = vpop.f32.mrf.mxu0
  %v244 = vadd.f32 %v199, %v243
  %v245 = vand.u32 %v29, 4294901760
  %v246 = vsub.f32 %v29, %v245
  %v247 = vand.u32 %v246, 4294901760
  %248 = vmatmul.f32.gmra.mxu0 %v247
  %v249 = vpop.f32.mrf.mxu0
  %v250 = vadd.f32 %v204, %v249
  %v251 = vand.u32 %v32, 4294901760
  %v252 = vsub.f32 %v32, %v251
  %v253 = vand.u32 %v252, 4294901760
  %254 = vmatmul.f32.gmra.mxu0 %v253
  %v255 = vpop.f32.mrf.mxu0
  %v256 = vadd.f32 %v209, %v255
  %v257 = vand.u32 %v35, 4294901760
  %v258 = vsub.f32 %v35, %v257
  %v259 = vand.u32 %v258, 4294901760
  %260 = vmatmul.f32.gmra.mxu0 %v259
  %v261 = vpop.f32.mrf.mxu0
  %v262 = vadd.f32 %v214, %v261
  %263 = vdwg.mxu0
  %264 = vmatpush.msra.mxu0 0.0
  %265 = vmatpush.msra.mxu0 0.0
  %266 = vmatpush.msra.mxu0 0.0
  %267 = vmatpush.msra.mxu0 0.0
  %268 = vmatpush.msra.mxu0 0.0
  %269 = vmatpush.msra.mxu0 0.0
  %270 = vmatpush.msra.mxu0 0.0
  %271 = vmatpush.msra.mxu0 0.0
  %272 = vmatpush.msra.mxu0 0.0
  %v273 = vand.u32 %v39, 4294901760
  %v274 = vsub.f32 %v39, %v273
  %v275 = vand.u32 %v274, 4294901760
  %276 = vmatpush.msra.mxu0 %v275
  %v277 = vand.u32 %v16, 4294901760
  %v278 = vsub.f32 %v16, %v277
  %v279 = vand.u32 %v278, 4294901760
  %280 = vmatpush.msra.mxu0 %v279
  %v281 = vand.u32 %v15, 4294901760
  %v282 = vsub.f32 %v15, %v281
  %v283 = vand.u32 %v282, 4294901760
  %284 = vmatpush.msra.mxu0 %v283
  %v285 = vand.u32 %v14, 4294901760
  %v286 = vsub.f32 %v14, %v285
  %v287 = vand.u32 %v286, 4294901760
  %288 = vmatpush.msra.mxu0 %v287
  %v289 = vand.u32 %v13, 4294901760
  %v290 = vsub.f32 %v13, %v289
  %v291 = vand.u32 %v290, 4294901760
  %292 = vmatpush.msra.mxu0 %v291
  %v293 = vand.u32 %v12, 4294901760
  %v294 = vsub.f32 %v12, %v293
  %v295 = vand.u32 %v294, 4294901760
  %296 = vmatpush.msra.mxu0 %v295
  %v297 = vand.u32 %v11, 4294901760
  %v298 = vsub.f32 %v11, %v297
  %v299 = vand.u32 %v298, 4294901760
  %300 = vmatpush.msra.mxu0 %v299
  %v301 = vand.u32 %v26, 4294901760
  %302 = vmatmul.f32.gmra.mxu0 %v301
  %v303 = vpop.f32.mrf.mxu0
  %v304 = vadd.f32 %v244, %v303
  %v305 = vand.u32 %v29, 4294901760
  %306 = vmatmul.f32.gmra.mxu0 %v305
  %v307 = vpop.f32.mrf.mxu0
  %v308 = vadd.f32 %v250, %v307
  %v309 = vand.u32 %v32, 4294901760
  %310 = vmatmul.f32.gmra.mxu0 %v309
  %v311 = vpop.f32.mrf.mxu0
  %v312 = vadd.f32 %v256, %v311
  %v313 = vand.u32 %v35, 4294901760
  %314 = vmatmul.f32.gmra.mxu0 %v313
  %v315 = vpop.f32.mrf.mxu0
  %v316 = vadd.f32 %v262, %v315
  %317 = vdwg.mxu0
  %318 = vmatpush.msra.mxu0 0.0
  %319 = vmatpush.msra.mxu0 0.0
  %320 = vmatpush.msra.mxu0 0.0
  %321 = vmatpush.msra.mxu0 0.0
  %322 = vmatpush.msra.mxu0 0.0
  %323 = vmatpush.msra.mxu0 0.0
  %324 = vmatpush.msra.mxu0 0.0
  %325 = vmatpush.msra.mxu0 0.0
  %326 = vmatpush.msra.mxu0 0.0
  %v327 = vand.u32 %v39, 4294901760
  %328 = vmatpush.msra.mxu0 %v327
  %v329 = vand.u32 %v16, 4294901760
  %330 = vmatpush.msra.mxu0 %v329
  %v331 = vand.u32 %v15, 4294901760
  %332 = vmatpush.msra.mxu0 %v331
  %v333 = vand.u32 %v14, 4294901760
  %334 = vmatpush.msra.mxu0 %v333
  %v335 = vand.u32 %v13, 4294901760
  %336 = vmatpush.msra.mxu0 %v335
  %v337 = vand.u32 %v12, 4294901760
  %338 = vmatpush.msra.mxu0 %v337
  %v339 = vand.u32 %v11, 4294901760
  %340 = vmatpush.msra.mxu0 %v339
  %v341 = vand.u32 %v26, 4294901760
  %342 = vmatmul.f32.gmra.mxu0 %v341
  %v343 = vpop.f32.mrf.mxu0
  %v344 = vadd.f32 %v304, %v343
  %v345 = vand.u32 %v29, 4294901760
  %346 = vmatmul.f32.gmra.mxu0 %v345
  %v347 = vpop.f32.mrf.mxu0
  %v348 = vadd.f32 %v308, %v347
  %v349 = vand.u32 %v32, 4294901760
  %350 = vmatmul.f32.gmra.mxu0 %v349
  %v351 = vpop.f32.mrf.mxu0
  %v352 = vadd.f32 %v312, %v351
  %v353 = vand.u32 %v35, 4294901760
  %354 = vmatmul.f32.gmra.mxu0 %v353
  %v355 = vpop.f32.mrf.mxu0
  %v356 = vadd.f32 %v316, %v355
  %357 = vdwg.mxu0
  %v358 = vtanh.pop %v344
  %v359 = vtanh.pop %v348
  %v360 = vtanh.pop %v352
  %v361 = vtanh.pop %v356
  %vm362 = vcmask 162816
  %363 = vst.msk [vmem:[%s2] sm:$0xff] %vm362, %v358
  %364 = vst.msk [vmem:[%s2 + $0x8] sm:$0xff] %vm362, %v359
  %365 = vst.msk [vmem:[%s2 + $0x10] sm:$0xff] %vm362, %v360
  %vm366 = vcmask 155648
  %367 = vst.msk [vmem:[%s2 + $0x18] sm:$0x1] %vm366, %v361
  // Predicated region
  $region10: #{model_tanh_forward.1} parent=0 // pred_check
    _
  $region11: #{model_tanh_forward.1} parent=0 // pred_check_branch
    %369 = sbr.rel (0) target = $region13
  $region12: #{model_tanh_forward.1} parent=0 // pred_region
    _
  $region13: #{model_tanh_forward.1} parent=0 // pred_fallthru
    _
  // Predicated region
  $region14: #{model_tanh_forward.1} parent=0 // pred_check
    _
  $region15: #{model_tanh_forward.1} parent=0 // pred_check_branch
    %371 = sbr.rel (0) target = $region17
  $region16: #{model_tanh_forward.1} parent=0 // pred_region
    _
  $region17: #{model_tanh_forward.1} parent=0 // pred_fallthru
    _

</llo_original>
